<compile_context>
chip_gen: v7x
topology: tpu7x:2x2x1
jax: 0.10.0
libtpu: 0.0.40
codegen_flags: <defaults>
</compile_context>

<pallas_src>
import jax
import jax.numpy as jnp
import numpy as np
from jax.experimental import pallas as pl
from jax.experimental.pallas import tpu as pltpu

INPUT_DIM = 29                 # node feature dim (module default)
HIDDEN = 64                    # gcn hidden dim
ONEHOT = 24                    # atom one-hot length
BOND_FEAT = INPUT_DIM + 140    # weight_FC input width (= 169)
DPAD = 128                     # lane-padded feature/hidden width


# ----------------------------- Pallas kernel -------------------------------

def _fused_mpnn_pool_kernel(x_ref, adj_ref, w1t_ref, b1_ref, w2t_ref, b2_ref,
                            pm_ref, out_ref, pool_ref):
    """One graph per grid step.

    GraphConvolution == tanh(adj @ (X @ W^T + b)): the nn.Linear bias is added
    BEFORE the adjacency aggregation, exactly like the reference (its own
    use_bias flag is False).  Layer A is followed by relu; layer B is the
    output.  Weights/biases are grid-invariant resident stacks indexed by
    program_id, so there is no per-step weight DMA.
    """
    g = pl.program_id(0)
    x = x_ref[0]            # (NPAD, DPAD)  bf16, zero-padded node features
    adj = adj_ref[0]        # (NPAD, NPAD)  bf16, zero-padded adjacency
    w1t = w1t_ref[g]        # (DPAD, DPAD)  bf16, pre-transposed, resident
    w2t = w2t_ref[g]
    b1 = b1_ref[g]          # (1, DPAD)     f32
    b2 = b2_ref[g]

    # layer A: relu(tanh(adj @ (X @ W1^T + b1)))   -- f32 accumulation
    s1 = jnp.dot(x, w1t, preferred_element_type=jnp.float32) + b1
    t1 = jnp.dot(adj, s1.astype(jnp.bfloat16),
                 preferred_element_type=jnp.float32)
    h = jnp.maximum(jnp.tanh(t1), 0.0)             # f32 EUP/VPU math

    # layer B: tanh(adj @ (H @ W2^T + b2))
    s2 = jnp.dot(h.astype(jnp.bfloat16), w2t,
                 preferred_element_type=jnp.float32) + b2
    out = jnp.tanh(jnp.dot(adj, s2.astype(jnp.bfloat16),
                           preferred_element_type=jnp.float32))

    out_ref[0] = out                               # (NPAD, DPAD) f32
    # masked mean pooling: cross-sublane sum (XLU/VPU), 1/n folded into mask
    pool_ref[0] = jnp.sum(out * pm_ref[0], axis=0, keepdims=True)


def fused_mpnn_pool(x_stack, adj_stack, w1t, b1, w2t, b2, pm_stack):
    """All three graphs in one pallas_call; grid axis is the graph index."""
    g, npad, dpad = x_stack.shape
    out_shape = (
        jax.ShapeDtypeStruct((g, npad, dpad), jnp.float32),   # atom outputs
        jax.ShapeDtypeStruct((g, 1, dpad), jnp.float32),      # pooled features
    )
    return pl.pallas_call(
        _fused_mpnn_pool_kernel,
        out_shape=out_shape,
        grid=(g,),
        in_specs=[
            pl.BlockSpec((1, npad, dpad), lambda i: (i, 0, 0)),   # X (bf16)
            pl.BlockSpec((1, npad, npad), lambda i: (i, 0, 0)),   # adj (bf16)
            pl.BlockSpec((g, dpad, dpad), lambda i: (0, 0, 0)),   # W1^T stack, resident
            pl.BlockSpec((g, 1, dpad), lambda i: (0, 0, 0)),      # b1 stack,  resident
            pl.BlockSpec((g, dpad, dpad), lambda i: (0, 0, 0)),   # W2^T stack, resident
            pl.BlockSpec((g, 1, dpad), lambda i: (0, 0, 0)),      # b2 stack,  resident
            pl.BlockSpec((1, npad, 1), lambda i: (i, 0, 0)),      # pooling mask (f32)
        ],
        out_specs=(
            pl.BlockSpec((1, npad, dpad), lambda i: (i, 0, 0)),
            pl.BlockSpec((1, 1, dpad), lambda i: (i, 0, 0)),
        ),
        compiler_params=pltpu.CompilerParams(
            dimension_semantics=("parallel",)),   # shard graphs across TCs (v7x)
    )(x_stack, adj_stack, w1t, b1, w2t, b2, pm_stack)


# ------------------------------- glue / model -------------------------------

def linear_params(key, in_f, out_f):
    k1, k2 = jax.random.split(key)
    bound = 1.0 / np.sqrt(in_f)
    w = jax.random.uniform(k1, (out_f, in_f), minval=-bound, maxval=bound,
                           dtype=jnp.float32)
    b = jax.random.uniform(k2, (out_f,), minval=-bound, maxval=bound,
                           dtype=jnp.float32)
    return w, b


def init_params(key):
    names_dims = [
        ("gcn1", INPUT_DIM, HIDDEN), ("gcn2", HIDDEN, INPUT_DIM),
        ("gcn3", INPUT_DIM, HIDDEN), ("gcn4", HIDDEN, INPUT_DIM),
        ("gcn5", INPUT_DIM, HIDDEN), ("gcn6", HIDDEN, INPUT_DIM),
        ("w_be", 1, 1), ("w_fc", BOND_FEAT, 1),
        ("w_bt", 4, 4), ("w_bt2", 4, 4), ("liner", 1, 1),
    ]
    params = {}
    keys = jax.random.split(key, len(names_dims))
    for k, (name, i, o) in zip(keys, names_dims):
        w, b = linear_params(k, i, o)
        params[name + "_w"] = w
        params[name + "_b"] = b
    return params


def prepare_params(params):
    """Pre-pad / pre-transpose / pre-cast the gcn weights ONCE (not per call)."""
    def pad_wt(w):              # torch Linear (out,in) -> (DPAD,DPAD) W^T, bf16
        out_f, in_f = w.shape
        m = jnp.zeros((DPAD, DPAD), jnp.float32)
        m = m.at[:in_f, :out_f].set(jnp.asarray(w, jnp.float32).T)
        return m.astype(jnp.bfloat16)

    def pad_b(b):
        v = jnp.zeros((1, DPAD), jnp.float32)
        return v.at[0, :b.shape[0]].set(jnp.asarray(b, jnp.float32))

    prep = dict(params)         # tiny 4x4 / 1x1 linears + weight_FC stay f32 glue
    prep["w1t"] = jnp.stack([pad_wt(params["gcn1_w"]), pad_wt(params["gcn3_w"]),
                             pad_wt(params["gcn5_w"])])
    prep["b1"] = jnp.stack([pad_b(params["gcn1_b"]), pad_b(params["gcn3_b"]),
                            pad_b(params["gcn5_b"])])
    prep["w2t"] = jnp.stack([pad_wt(params["gcn2_w"]), pad_wt(params["gcn4_w"]),
                             pad_wt(params["gcn6_w"])])
    prep["b2"] = jnp.stack([pad_b(params["gcn2_b"]), pad_b(params["gcn4_b"]),
                            pad_b(params["gcn6_b"])])
    return prep


def block_diag_adj(a1, a2):
    n1, n2 = a1.shape[0], a2.shape[0]
    top = jnp.concatenate([a1, jnp.zeros((n1, n2), jnp.float32)], axis=1)
    bot = jnp.concatenate([jnp.zeros((n2, n1), jnp.float32), a2], axis=1)
    return jnp.concatenate([top, bot], axis=0)


def redout_p_bond(out_P, bond_i, bond_j, onehot_P, bondtype_oh, nb_type,
                  ep_atom, bond_energy, prep):
    """Redout_P_Bond_Test hot path with synthetic (RDKit-free) side features.

    The FC head (sigmoid(weight_FC(feat))) runs as fused XLA glue with the
    gather/concat that builds `feat` -- no separate pallas_call.
    """
    oi, oj = out_P[bond_i], out_P[bond_j]
    ohi, ohj = onehot_P[bond_i], onehot_P[bond_j]

    # add = cat(atom1_feature, output[i]) + cat(atom2_feature, output[j])
    add53 = jnp.concatenate([ohi, oi], axis=1) + jnp.concatenate([ohj, oj], axis=1)

    # TODO(synk): sort_atoms_by_rule needs RDKit atomic numbers / neighbor
    # counts; deterministic index ordering used instead.
    a1 = jnp.minimum(bond_i, bond_j)
    a2 = jnp.maximum(bond_i, bond_j)

    # tiny 4x4 / 1x1 linears (weight_BondType / weight_BondType2 / liner /
    # weight_BondEnergy) stay as XLA glue fused under jit.
    bt = bondtype_oh @ prep["w_bt_w"].T + prep["w_bt_b"]
    nbt = (nb_type[bond_i] + nb_type[bond_j]) @ prep["w_bt2_w"].T + prep["w_bt2_b"]
    ep = jnp.abs(ep_atom[bond_i] - ep_atom[bond_j])[:, None]
    ep = ep * prep["liner_w"][0, 0] + prep["liner_b"][0]
    be = (bond_energy / jnp.maximum(jnp.max(bond_energy), 1e-6))[:, None]
    be = be * prep["w_be_w"][0, 0] + prep["w_be_b"][0]

    feat = jnp.concatenate(
        [bt, add53, out_P[a1], out_P[a2], onehot_P[a1], onehot_P[a2],
         nbt, ep, be], axis=1)
    assert feat.shape[1] == BOND_FEAT

    # sigmoid(weight_FC(feat)) -- (nb,169)@(169,) matvec, fused by XLA
    probs = jax.nn.sigmoid(feat @ prep["w_fc_w"].reshape(-1) + prep["w_fc_b"][0])
    return feat, probs


@jax.jit
def redout_forward(prep, Feature_P, adj_P, break_id1, break_id2,
                   bond_i, bond_j, onehot_P, bondtype_oh, nb_type, ep_atom,
                   bond_energy, Feature_R1, Feature_R2, adj_R1, adj_R2,
                   Neg_Feature_P, Neg_adj_P):
    n_p = Feature_P.shape[0]
    n_r = Feature_R1.shape[0] + Feature_R2.shape[0]
    n_neg = Neg_Feature_P.shape[0]
    npad = ((max(n_p, n_r, n_neg) + 15) // 16) * 16    # static; bf16 sublane pack

    def pad_feat(x):
        return (jnp.zeros((npad, DPAD), jnp.bfloat16)
                .at[:x.shape[0], :x.shape[1]].set(x.astype(jnp.bfloat16)))

    def pad_adj(a):
        return (jnp.zeros((npad, npad), jnp.bfloat16)
                .at[:a.shape[0], :a.shape[1]].set(a.astype(jnp.bfloat16)))

    def pool_mask(n):
        return ((jnp.arange(npad) < n).astype(jnp.float32) / float(n))[:, None]

    # graph order: 0 = product P (gcn1/2), 1 = reactants R (gcn3/4), 2 = negative (gcn5/6)
    Feature_R = jnp.concatenate([Feature_R1, Feature_R2], axis=0)
    adj_R = block_diag_adj(adj_R1, adj_R2)

    x_stack = jnp.stack([pad_feat(Feature_P), pad_feat(Feature_R),
                         pad_feat(Neg_Feature_P)])
    adj_stack = jnp.stack([pad_adj(adj_P), pad_adj(adj_R), pad_adj(Neg_adj_P)])
    pm_stack = jnp.stack([pool_mask(n_p), pool_mask(n_r), pool_mask(n_neg)])

    atom_out, pooled = fused_mpnn_pool(
        x_stack, adj_stack, prep["w1t"], prep["b1"], prep["w2t"], prep["b2"],
        pm_stack)

    Atom_output_P = atom_out[0, :n_p, :INPUT_DIM]
    P_Feature = pooled[0, 0, :INPUT_DIM]
    R_Feature = pooled[1, 0, :INPUT_DIM]
    Neg_P_Feature = pooled[2, 0, :INPUT_DIM]

    # Bond readout head (fused XLA glue, no second pallas_call)
    outputs_list, output_Bond_RedOut_P = redout_p_bond(
        Atom_output_P, bond_i, bond_j, onehot_P, bondtype_oh, nb_type,
        ep_atom, bond_energy, prep)

    # The reference Test path also labels only the directed (id1,id2) edge.
    Label_P = ((bond_i == break_id1) & (bond_j == break_id2)).astype(jnp.float32)

    # Positive_bondfeature[id] = cat(atom_onehot, output[id]); then
    # Atom_feature_id = cat(that, Atom_output_P[id]).unsqueeze(0)
    pos1 = jnp.concatenate([onehot_P[break_id1], Atom_output_P[break_id1]])
    pos2 = jnp.concatenate([onehot_P[break_id2], Atom_output_P[break_id2]])
    Atom_feature_id1 = jnp.concatenate([pos1, Atom_output_P[break_id1]])[None, :]
    Atom_feature_id2 = jnp.concatenate([pos2, Atom_output_P[break_id2]])[None, :]

    # TODO(synk): Atom_symbol / Bond_symbol require RDKit substructure SMILES.
    return (Atom_feature_id1, Atom_feature_id2, output_Bond_RedOut_P, Label_P,
            P_Feature, R_Feature, Neg_P_Feature, outputs_list)


# ----------------------------------- main -----------------------------------

if __name__ == "__main__":
    key = jax.random.PRNGKey(0)
    k_param, k_data = jax.random.split(key)
    params = init_params(k_param)
    prep = prepare_params(params)          # pad/transpose/cast weights once

    N_P, N_R1, N_R2, N_NEG = 8, 4, 6, 8
    ks = jax.random.split(k_data, 12)

    def ring_adj(n, kk):
        a = np.zeros((n, n), np.float32)
        w = np.asarray(jax.random.uniform(kk, (n,), minval=0.5, maxval=1.0))
        for i in range(n):
            j = (i + 1) % n
            a[i, j] = a[j, i] = w[i]
        return jnp.asarray(a)

    Feature_P = jax.random.normal(ks[0], (N_P, INPUT_DIM), jnp.float32)
    adj_P = ring_adj(N_P, ks[1])
    Feature_R1 = jax.random.normal(ks[2], (N_R1, INPUT_DIM), jnp.float32)
    Feature_R2 = jax.random.normal(ks[3], (N_R2, INPUT_DIM), jnp.float32)
    adj_R1 = ring_adj(N_R1, ks[4])
    adj_R2 = ring_adj(N_R2, ks[5])
    Neg_Feature_P = jax.random.normal(ks[6], (N_NEG, INPUT_DIM), jnp.float32)
    Neg_adj_P = ring_adj(N_NEG, ks[7])

    # synthetic RDKit-derived side features (deterministic)
    onehot_P = jax.nn.one_hot(jnp.arange(N_P) % ONEHOT, ONEHOT, dtype=jnp.float32)
    nb_type = jax.nn.softmax(jax.random.normal(ks[8], (N_P, 4)), axis=-1)
    ep_atom = jax.random.normal(ks[9], (N_P,), jnp.float32)

    # directed bond list from the product adjacency (both orders, like the
    # Test-path double loop).  TODO(synk): RDKit IsInRing bond filtering is not
    # reproduced (synthetic bond list keeps all directed bonds).
    adj_np = np.asarray(adj_P)
    bi, bj = [], []
    for i in range(N_P):
        for j in range(N_P):
            if i != j and adj_np[i, j] > 0:
                bi.append(i)
                bj.append(j)
    bond_i = jnp.asarray(bi, jnp.int32)
    bond_j = jnp.asarray(bj, jnp.int32)
    n_bonds = bond_i.shape[0]

    bondtype_oh = jax.nn.one_hot(jnp.arange(n_bonds) % 4, 4, dtype=jnp.float32)
    bond_energy = jax.random.uniform(ks[10], (n_bonds,), minval=0.5, maxval=4.0)

    BreakBondID = "1,2"
    break_id1, break_id2 = (int(s) for s in BreakBondID.split(","))

    outs = redout_forward(
        prep, Feature_P, adj_P, break_id1, break_id2, bond_i, bond_j,
        onehot_P, bondtype_oh, nb_type, ep_atom, bond_energy,
        Feature_R1, Feature_R2, adj_R1, adj_R2, Neg_Feature_P, Neg_adj_P)

    outs = jax.block_until_ready(outs)

    (af1, af2, probs, labels, p_feat, r_feat, neg_feat, bond_feats) = outs
    assert af1.shape == (1, ONEHOT + 2 * INPUT_DIM)
    assert af2.shape == (1, ONEHOT + 2 * INPUT_DIM)
    assert probs.shape == (n_bonds,)
    assert labels.shape == (n_bonds,)
    assert p_feat.shape == (INPUT_DIM,)
    assert r_feat.shape == (INPUT_DIM,)
    assert neg_feat.shape == (INPUT_DIM,)
    assert bond_feats.shape == (n_bonds, BOND_FEAT)
    assert bool(jnp.all((probs > 0.0) & (probs < 1.0)))
    assert bool(jnp.all(jnp.isfinite(probs)))
    assert bool(jnp.all(jnp.isfinite(bond_feats)))

    print("KERNEL_OK")
</pallas_src>

<mosaic_0001>
module attributes {stable_mosaic.version = 11 : i64} {
  func.func @_fused_mpnn_pool_kernel(%arg0: i32, %arg1: memref<1x16x128xbf16, #tpu.memory_space<vmem>>, %arg2: memref<1x16x16xbf16, #tpu.memory_space<vmem>>, %arg3: memref<3x128x128xbf16, #tpu.memory_space<vmem>>, %arg4: memref<3x1x128xf32, #tpu.memory_space<vmem>>, %arg5: memref<3x128x128xbf16, #tpu.memory_space<vmem>>, %arg6: memref<3x1x128xf32, #tpu.memory_space<vmem>>, %arg7: memref<1x16x1xf32, #tpu.memory_space<vmem>>, %arg8: memref<1x16x128xf32, #tpu.memory_space<vmem>>, %arg9: memref<1x1x128xf32, #tpu.memory_space<vmem>>) attributes {dimension_semantics = [#tpu.dimension_semantics<parallel>], iteration_bounds = array<i64: 3>, scalar_prefetch = 0 : i64, scratch_operands = 0 : i64, tpu.core_type = #tpu.core_type<tc>, window_params = [{transform_indices = @transform_0, window_bounds = array<i64: 1, 16, 128>}, {transform_indices = @transform_1, window_bounds = array<i64: 1, 16, 16>}, {pipeline_mode = #tpu.pipeline_mode<synchronous>, transform_indices = @transform_2, window_bounds = array<i64: 3, 128, 128>}, {pipeline_mode = #tpu.pipeline_mode<synchronous>, transform_indices = @transform_3, window_bounds = array<i64: 3, 1, 128>}, {pipeline_mode = #tpu.pipeline_mode<synchronous>, transform_indices = @transform_4, window_bounds = array<i64: 3, 128, 128>}, {pipeline_mode = #tpu.pipeline_mode<synchronous>, transform_indices = @transform_5, window_bounds = array<i64: 3, 1, 128>}, {transform_indices = @transform_6, window_bounds = array<i64: 1, 16, 1>}, {transform_indices = @transform_7, window_bounds = array<i64: 1, 16, 128>}, {transform_indices = @transform_8, window_bounds = array<i64: 1, 1, 128>}]} {
    %c0 = arith.constant 0 : index
    %c0_0 = arith.constant 0 : index
    %c0_1 = arith.constant 0 : index
    %0 = vector.load %arg1[%c0, %c0_0, %c0_1] : memref<1x16x128xbf16, #tpu.memory_space<vmem>>, vector<1x16x128xbf16>
    %1 = vector.shape_cast %0 : vector<1x16x128xbf16> to vector<16x128xbf16>
    %c0_2 = arith.constant 0 : index
    %c0_3 = arith.constant 0 : index
    %c0_4 = arith.constant 0 : index
    %2 = vector.load %arg2[%c0_2, %c0_3, %c0_4] : memref<1x16x16xbf16, #tpu.memory_space<vmem>>, vector<1x16x16xbf16>
    %3 = vector.shape_cast %2 : vector<1x16x16xbf16> to vector<16x16xbf16>
    %4 = arith.index_cast %arg0 : i32 to index
    %c0_5 = arith.constant 0 : index
    %c0_6 = arith.constant 0 : index
    %5 = vector.load %arg3[%4, %c0_5, %c0_6] : memref<3x128x128xbf16, #tpu.memory_space<vmem>>, vector<1x128x128xbf16>
    %6 = vector.shape_cast %5 : vector<1x128x128xbf16> to vector<128x128xbf16>
    %7 = arith.index_cast %arg0 : i32 to index
    %c0_7 = arith.constant 0 : index
    %c0_8 = arith.constant 0 : index
    %8 = vector.load %arg5[%7, %c0_7, %c0_8] : memref<3x128x128xbf16, #tpu.memory_space<vmem>>, vector<1x128x128xbf16>
    %9 = vector.shape_cast %8 : vector<1x128x128xbf16> to vector<128x128xbf16>
    %10 = arith.index_cast %arg0 : i32 to index
    %c0_9 = arith.constant 0 : index
    %c0_10 = arith.constant 0 : index
    %11 = vector.load %arg4[%10, %c0_9, %c0_10] : memref<3x1x128xf32, #tpu.memory_space<vmem>>, vector<1x1x128xf32>
    %12 = vector.shape_cast %11 : vector<1x1x128xf32> to vector<1x128xf32>
    %13 = arith.index_cast %arg0 : i32 to index
    %c0_11 = arith.constant 0 : index
    %c0_12 = arith.constant 0 : index
    %14 = vector.load %arg6[%13, %c0_11, %c0_12] : memref<3x1x128xf32, #tpu.memory_space<vmem>>, vector<1x1x128xf32>
    %15 = vector.shape_cast %14 : vector<1x1x128xf32> to vector<1x128xf32>
    %cst = arith.constant dense<0.000000e+00> : vector<16x128xf32>
    %16 = tpu.matmul %1, %6, %cst {dimension_numbers = #tpu.dot_dimension_numbers<[1], [0], [0], [1], [0, 0, 1, 1], [], []>} : vector<16x128xbf16>, vector<128x128xbf16>, vector<16x128xf32> -> vector<16x128xf32>
    %17 = vector.broadcast %12 : vector<1x128xf32> to vector<16x128xf32>
    %18 = arith.addf %16, %17 : vector<16x128xf32>
    %19 = arith.truncf %18 : vector<16x128xf32> to vector<16x128xbf16>
    %cst_13 = arith.constant dense<0.000000e+00> : vector<16x128xf32>
    %20 = tpu.matmul %3, %19, %cst_13 {dimension_numbers = #tpu.dot_dimension_numbers<[1], [0], [0], [1], [0, 0, 1, 1], [], []>} : vector<16x16xbf16>, vector<16x128xbf16>, vector<16x128xf32> -> vector<16x128xf32>
    %21 = math.tanh %20 : vector<16x128xf32>
    %cst_14 = arith.constant 0.000000e+00 : f32
    %22 = vector.broadcast %cst_14 : f32 to vector<16x128xf32>
    %23 = arith.maximumf %21, %22 : vector<16x128xf32>
    %24 = arith.truncf %23 : vector<16x128xf32> to vector<16x128xbf16>
    %cst_15 = arith.constant dense<0.000000e+00> : vector<16x128xf32>
    %25 = tpu.matmul %24, %9, %cst_15 {dimension_numbers = #tpu.dot_dimension_numbers<[1], [0], [0], [1], [0, 0, 1, 1], [], []>} : vector<16x128xbf16>, vector<128x128xbf16>, vector<16x128xf32> -> vector<16x128xf32>
    %26 = vector.broadcast %15 : vector<1x128xf32> to vector<16x128xf32>
    %27 = arith.addf %25, %26 : vector<16x128xf32>
    %28 = arith.truncf %27 : vector<16x128xf32> to vector<16x128xbf16>
    %cst_16 = arith.constant dense<0.000000e+00> : vector<16x128xf32>
    %29 = tpu.matmul %3, %28, %cst_16 {dimension_numbers = #tpu.dot_dimension_numbers<[1], [0], [0], [1], [0, 0, 1, 1], [], []>} : vector<16x16xbf16>, vector<16x128xbf16>, vector<16x128xf32> -> vector<16x128xf32>
    %30 = math.tanh %29 : vector<16x128xf32>
    %c0_17 = arith.constant 0 : index
    %c0_18 = arith.constant 0 : index
    %c0_19 = arith.constant 0 : index
    %31 = vector.load %arg8[%c0_17, %c0_18, %c0_19] : memref<1x16x128xf32, #tpu.memory_space<vmem>>, vector<1x16x128xf32>
    %32 = vector.shape_cast %31 : vector<1x16x128xf32> to vector<16x128xf32>
    %33 = vector.shape_cast %30 : vector<16x128xf32> to vector<1x16x128xf32>
    tpu.vector_store %arg8[%c0_17, %c0_18, %c0_19], %33 {strides = array<i32>} : memref<1x16x128xf32, #tpu.memory_space<vmem>>, vector<1x16x128xf32>,
    %c0_20 = arith.constant 0 : index
    %c0_21 = arith.constant 0 : index
    %c0_22 = arith.constant 0 : index
    %34 = vector.load %arg7[%c0_20, %c0_21, %c0_22] : memref<1x16x1xf32, #tpu.memory_space<vmem>>, vector<1x16x1xf32>
    %35 = vector.shape_cast %34 : vector<1x16x1xf32> to vector<16x1xf32>
    %36 = vector.broadcast %35 : vector<16x1xf32> to vector<16x128xf32>
    %37 = arith.mulf %30, %36 : vector<16x128xf32>
    %cst_23 = arith.constant dense<0.000000e+00> : vector<128xf32>
    %38 = vector.multi_reduction <add>, %37, %cst_23 [0] : vector<16x128xf32> to vector<128xf32>
    %39 = vector.shape_cast %38 : vector<128xf32> to vector<1x128xf32>
    %c0_24 = arith.constant 0 : index
    %c0_25 = arith.constant 0 : index
    %c0_26 = arith.constant 0 : index
    %40 = vector.load %arg9[%c0_24, %c0_25, %c0_26] : memref<1x1x128xf32, #tpu.memory_space<vmem>>, vector<1x1x128xf32>
    %41 = vector.shape_cast %40 : vector<1x1x128xf32> to vector<1x128xf32>
    %42 = vector.shape_cast %39 : vector<1x128xf32> to vector<1x1x128xf32>
    tpu.vector_store %arg9[%c0_24, %c0_25, %c0_26], %42 {strides = array<i32>} : memref<1x1x128xf32, #tpu.memory_space<vmem>>, vector<1x1x128xf32>,
    return
  }
  func.func @transform_0(%arg0: i32) -> (i32, i32, i32) {
    %c0_i32 = arith.constant 0 : i32
    %c0_i32_0 = arith.constant 0 : i32
    %c0_i32_1 = arith.constant 0 : i32
    return %arg0, %c0_i32, %c0_i32_0 : i32, i32, i32
  }
  func.func @transform_1(%arg0: i32) -> (i32, i32, i32) {
    %c0_i32 = arith.constant 0 : i32
    %c0_i32_0 = arith.constant 0 : i32
    %c0_i32_1 = arith.constant 0 : i32
    return %arg0, %c0_i32, %c0_i32_0 : i32, i32, i32
  }
  func.func @transform_2(%arg0: i32) -> (i32, i32, i32) {
    %c0_i32 = arith.constant 0 : i32
    %c0_i32_0 = arith.constant 0 : i32
    %c0_i32_1 = arith.constant 0 : i32
    %c0_i32_2 = arith.constant 0 : i32
    return %c0_i32, %c0_i32_0, %c0_i32_1 : i32, i32, i32
  }
  func.func @transform_3(%arg0: i32) -> (i32, i32, i32) {
    %c0_i32 = arith.constant 0 : i32
    %c0_i32_0 = arith.constant 0 : i32
    %c0_i32_1 = arith.constant 0 : i32
    %c0_i32_2 = arith.constant 0 : i32
    return %c0_i32, %c0_i32_0, %c0_i32_1 : i32, i32, i32
  }
  func.func @transform_4(%arg0: i32) -> (i32, i32, i32) {
    %c0_i32 = arith.constant 0 : i32
    %c0_i32_0 = arith.constant 0 : i32
    %c0_i32_1 = arith.constant 0 : i32
    %c0_i32_2 = arith.constant 0 : i32
    return %c0_i32, %c0_i32_0, %c0_i32_1 : i32, i32, i32
  }
  func.func @transform_5(%arg0: i32) -> (i32, i32, i32) {
    %c0_i32 = arith.constant 0 : i32
    %c0_i32_0 = arith.constant 0 : i32
    %c0_i32_1 = arith.constant 0 : i32
    %c0_i32_2 = arith.constant 0 : i32
    return %c0_i32, %c0_i32_0, %c0_i32_1 : i32, i32, i32
  }
  func.func @transform_6(%arg0: i32) -> (i32, i32, i32) {
    %c0_i32 = arith.constant 0 : i32
    %c0_i32_0 = arith.constant 0 : i32
    %c0_i32_1 = arith.constant 0 : i32
    return %arg0, %c0_i32, %c0_i32_0 : i32, i32, i32
  }
  func.func @transform_7(%arg0: i32) -> (i32, i32, i32) {
    %c0_i32 = arith.constant 0 : i32
    %c0_i32_0 = arith.constant 0 : i32
    %c0_i32_1 = arith.constant 0 : i32
    return %arg0, %c0_i32, %c0_i32_0 : i32, i32, i32
  }
  func.func @transform_8(%arg0: i32) -> (i32, i32, i32) {
    %c0_i32 = arith.constant 0 : i32
    %c0_i32_0 = arith.constant 0 : i32
    %c0_i32_1 = arith.constant 0 : i32
    return %arg0, %c0_i32, %c0_i32_0 : i32, i32, i32
  }
}

</mosaic_0001>

<llo_original>
// kernel: redout_forward.1
$region0: #{redout_forward.1}
  #allocation0 [shape = 'u32[]', space=smem, size = 0x4, offset = 0x4, fixed_abs, tag = 'smem constant byte address 0x4 - core index']
  #allocation1 [shape = 'u32[144,128]{1,0:T(1,128)}', space=vmem, size = 0x12000, scoped, tag = 'internal scratch']
  %s0 = inlined_call_operand.vmem [shape: bf16[3,16,128], index: 0, kind: input, shape index: {}]
  %s1 = inlined_call_operand.vmem [shape: bf16[3,16,16], index: 1, kind: input, shape index: {}]
  %s2 = inlined_call_operand.vmem [shape: bf16[3,128,128], index: 2, kind: input, shape index: {}]
  %s3 = inlined_call_operand.hbm [shape: f32[3,1,128], index: 3, kind: input, shape index: {}]
  %s4 = inlined_call_operand.vmem [shape: bf16[3,128,128], index: 4, kind: input, shape index: {}]
  %s5 = inlined_call_operand.hbm [shape: f32[3,1,128], index: 5, kind: input, shape index: {}]
  %s6 = inlined_call_operand.vmem [shape: f32[3,16,1], index: 6, kind: input, shape index: {}]
  %s7 = inlined_call_operand.vmem [shape: f32[3,16,128], index: 7, kind: output, shape index: {0}]
  %s8 = inlined_call_operand.vmem [shape: f32[3,1,128], index: 8, kind: output, shape index: {1}]
  %9 = xla_tuple %s7, %s8
  %s10 = sld [smem:[#allocation0]]
  $region77: #{redout_forward.1} parent=0
    _
  %s12 = ssub.s32 1, %s10
  %s13 = scalar_select 0, %s12, %s10
  $region1: #{redout_forward.1} parent=0
    #allocation2 [shape = 'u8[1536]{0}', space=vmem, size = 0x800, scoped, tag = 'input window, operand 3, single buffered']
    #allocation3 [shape = 's32[2]{0}', space=sflag, size = 0x8, scoped, tag = 'scoped memory for redout_forward.1']
    #allocation4 [shape = 'u8[1536]{0}', space=vmem, size = 0x800, scoped, tag = 'input window, operand 5, single buffered']
    #allocation5 [shape = 's32[1]{0}', space=sflag, size = 0x4, scoped, tag = 'scoped memory for redout_forward.1']
    %14 = vsyncpa [#allocation3], 0
    %15 = vsyncpa [#allocation5], 0
    loop: start=0, step=1, limit=5
    $region2: #{redout_forward.1} parent=1 // loop_pre_header
      _
    $region3: #{redout_forward.1} parent=1 // loop_header
      %s17 = sphi 0, %s21
      %p18 = scmp.ge.s32.totalorder %s17, 5
      %s27 = sphi 0, %s29
      %s30 = sphi 0, %s27
      %s31 = sphi 0, %s30
      %s47 = sphi 0, %s31
      %s53 = sphi 0, %s55
      %s56 = sphi 0, %s53
      %s57 = sphi 0, %s56
      %s73 = sphi 0, %s57
      %s77 = sphi 0, %s77
      %s79 = sphi 0, %s77
      %s80 = sphi 0, %s79
      %s94 = sphi 0, %s80
      %s98 = sphi 0, %s98
      %s100 = sphi 0, %s98
      %s101 = sphi 0, %s100
      %s115 = sphi 0, %s101
      %s119 = sphi 0, %s119
      %s121 = sphi 0, %s119
      %s122 = sphi 0, %s121
      %s136 = sphi 0, %s122
      %s140 = sphi 0, %s140
      %s142 = sphi 0, %s140
      %s143 = sphi 0, %s142
      %s157 = sphi 0, %s143
      %s163 = sphi 0, %s165
      %s166 = sphi 0, %s163
      %s167 = sphi 0, %s166
      %s183 = sphi 0, %s167
      %s189 = sphi 0, %s191
      %s192 = sphi 0, %s189
      %s193 = sphi 0, %s192
      %s209 = sphi 0, %s193
      %s215 = sphi 0, %s217
      %s218 = sphi 0, %s215
      %s219 = sphi 0, %s218
      %s235 = sphi 0, %s219
    $region4: #{redout_forward.1} parent=1 // loop_header_branch
      %20 = sbr.rel (%p18) target = $region8
    $region5: #{redout_forward.1} parent=1 // loop_body
      %s22 = ssub.s32 %s17, 1
      %s23 = ssub.s32 %s17, 2
      %s24 = sadd.s32 %s17, 1
      %s25 = ssub.s32 %s17, %s24
      %p26 = scmp.eq.s32.totalorder %s25, 0
      %s28 = sadd.s32 %s27, 1
      %s29 = scalar_select %p26, %s27, %s28
      %p32 = pneg %p26
      %p33 = scmp.eq.s32.totalorder %s17, 2
      %p34 = por %p32, %p33
      %p35 = scmp.ne.s32.totalorder %s27, %s30
      %p36 = scmp.eq.s32.totalorder %s17, 0
      %p37 = por %p35, %p36
      %p38 = scmp.ne.s32.totalorder %s27, %s30
      %p39 = scmp.eq.s32.totalorder %s22, 2
      %p40 = por %p38, %p39
      %p41 = scmp.ne.s32.totalorder %s30, %s31
      %p42 = scmp.eq.s32.totalorder %s22, 0
      %p43 = por %p41, %p42
      %p44 = scmp.ne.s32.totalorder %s30, %s31
      %p45 = scmp.eq.s32.totalorder %s23, 2
      %p46 = por %p44, %p45
      %p48 = scmp.ne.s32.totalorder %s31, %s47
      %p49 = scmp.eq.s32.totalorder %s23, 0
      %p50 = por %p48, %p49
      %s51 = ssub.s32 %s17, %s24
      %p52 = scmp.eq.s32.totalorder %s51, 0
      %s54 = sadd.s32 %s53, 1
      %s55 = scalar_select %p52, %s53, %s54
      %p58 = pneg %p52
      %p59 = scmp.eq.s32.totalorder %s17, 2
      %p60 = por %p58, %p59
      %p61 = scmp.ne.s32.totalorder %s53, %s56
      %p62 = scmp.eq.s32.totalorder %s17, 0
      %p63 = por %p61, %p62
      %p64 = scmp.ne.s32.totalorder %s53, %s56
      %p65 = scmp.eq.s32.totalorder %s22, 2
      %p66 = por %p64, %p65
      %p67 = scmp.ne.s32.totalorder %s56, %s57
      %p68 = scmp.eq.s32.totalorder %s22, 0
      %p69 = por %p67, %p68
      %p70 = scmp.ne.s32.totalorder %s56, %s57
      %p71 = scmp.eq.s32.totalorder %s23, 2
      %p72 = por %p70, %p71
      %p74 = scmp.ne.s32.totalorder %s57, %s73
      %p75 = scmp.eq.s32.totalorder %s23, 0
      %p76 = por %p74, %p75
      %s78 = sadd.s32 %s77, 1
      %p81 = scmp.eq.s32.totalorder %s17, 2
      %p82 = scmp.ne.s32.totalorder %s77, %s79
      %p83 = scmp.eq.s32.totalorder %s17, 0
      %p84 = por %p82, %p83
      %p85 = scmp.ne.s32.totalorder %s77, %s79
      %p86 = scmp.eq.s32.totalorder %s22, 2
      %p87 = por %p85, %p86
      %p88 = scmp.ne.s32.totalorder %s79, %s80
      %p89 = scmp.eq.s32.totalorder %s22, 0
      %p90 = por %p88, %p89
      %p91 = scmp.ne.s32.totalorder %s79, %s80
      %p92 = scmp.eq.s32.totalorder %s23, 2
      %p93 = por %p91, %p92
      %p95 = scmp.ne.s32.totalorder %s80, %s94
      %p96 = scmp.eq.s32.totalorder %s23, 0
      %p97 = por %p95, %p96
      %s99 = sadd.s32 %s98, 1
      %p102 = scmp.eq.s32.totalorder %s17, 2
      %p103 = scmp.ne.s32.totalorder %s98, %s100
      %p104 = scmp.eq.s32.totalorder %s17, 0
      %p105 = por %p103, %p104
      %p106 = scmp.ne.s32.totalorder %s98, %s100
      %p107 = scmp.eq.s32.totalorder %s22, 2
      %p108 = por %p106, %p107
      %p109 = scmp.ne.s32.totalorder %s100, %s101
      %p110 = scmp.eq.s32.totalorder %s22, 0
      %p111 = por %p109, %p110
      %p112 = scmp.ne.s32.totalorder %s100, %s101
      %p113 = scmp.eq.s32.totalorder %s23, 2
      %p114 = por %p112, %p113
      %p116 = scmp.ne.s32.totalorder %s101, %s115
      %p117 = scmp.eq.s32.totalorder %s23, 0
      %p118 = por %p116, %p117
      %s120 = sadd.s32 %s119, 1
      %p123 = scmp.eq.s32.totalorder %s17, 2
      %p124 = scmp.ne.s32.totalorder %s119, %s121
      %p125 = scmp.eq.s32.totalorder %s17, 0
      %p126 = por %p124, %p125
      %p127 = scmp.ne.s32.totalorder %s119, %s121
      %p128 = scmp.eq.s32.totalorder %s22, 2
      %p129 = por %p127, %p128
      %p130 = scmp.ne.s32.totalorder %s121, %s122
      %p131 = scmp.eq.s32.totalorder %s22, 0
      %p132 = por %p130, %p131
      %p133 = scmp.ne.s32.totalorder %s121, %s122
      %p134 = scmp.eq.s32.totalorder %s23, 2
      %p135 = por %p133, %p134
      %p137 = scmp.ne.s32.totalorder %s122, %s136
      %p138 = scmp.eq.s32.totalorder %s23, 0
      %p139 = por %p137, %p138
      %s141 = sadd.s32 %s140, 1
      %p144 = scmp.eq.s32.totalorder %s17, 2
      %p145 = scmp.ne.s32.totalorder %s140, %s142
      %p146 = scmp.eq.s32.totalorder %s17, 0
      %p147 = por %p145, %p146
      %p148 = scmp.ne.s32.totalorder %s140, %s142
      %p149 = scmp.eq.s32.totalorder %s22, 2
      %p150 = por %p148, %p149
      %p151 = scmp.ne.s32.totalorder %s142, %s143
      %p152 = scmp.eq.s32.totalorder %s22, 0
      %p153 = por %p151, %p152
      %p154 = scmp.ne.s32.totalorder %s142, %s143
      %p155 = scmp.eq.s32.totalorder %s23, 2
      %p156 = por %p154, %p155
      %p158 = scmp.ne.s32.totalorder %s143, %s157
      %p159 = scmp.eq.s32.totalorder %s23, 0
      %p160 = por %p158, %p159
      %s161 = ssub.s32 %s17, %s24
      %p162 = scmp.eq.s32.totalorder %s161, 0
      %s164 = sadd.s32 %s163, 1
      %s165 = scalar_select %p162, %s163, %s164
      %p168 = pneg %p162
      %p169 = scmp.eq.s32.totalorder %s17, 2
      %p170 = por %p168, %p169
      %p171 = scmp.ne.s32.totalorder %s163, %s166
      %p172 = scmp.eq.s32.totalorder %s17, 0
      %p173 = por %p171, %p172
      %p174 = scmp.ne.s32.totalorder %s163, %s166
      %p175 = scmp.eq.s32.totalorder %s22, 2
      %p176 = por %p174, %p175
      %p177 = scmp.ne.s32.totalorder %s166, %s167
      %p178 = scmp.eq.s32.totalorder %s22, 0
      %p179 = por %p177, %p178
      %p180 = scmp.ne.s32.totalorder %s166, %s167
      %p181 = scmp.eq.s32.totalorder %s23, 2
      %p182 = por %p180, %p181
      %p184 = scmp.ne.s32.totalorder %s167, %s183
      %p185 = scmp.eq.s32.totalorder %s23, 0
      %p186 = por %p184, %p185
      %s187 = ssub.s32 %s17, %s24
      %p188 = scmp.eq.s32.totalorder %s187, 0
      %s190 = sadd.s32 %s189, 1
      %s191 = scalar_select %p188, %s189, %s190
      %p194 = pneg %p188
      %p195 = scmp.eq.s32.totalorder %s17, 2
      %p196 = por %p194, %p195
      %p197 = scmp.ne.s32.totalorder %s189, %s192
      %p198 = scmp.eq.s32.totalorder %s17, 0
      %p199 = por %p197, %p198
      %p200 = scmp.ne.s32.totalorder %s189, %s192
      %p201 = scmp.eq.s32.totalorder %s22, 2
      %p202 = por %p200, %p201
      %p203 = scmp.ne.s32.totalorder %s192, %s193
      %p204 = scmp.eq.s32.totalorder %s22, 0
      %p205 = por %p203, %p204
      %p206 = scmp.ne.s32.totalorder %s192, %s193
      %p207 = scmp.eq.s32.totalorder %s23, 2
      %p208 = por %p206, %p207
      %p210 = scmp.ne.s32.totalorder %s193, %s209
      %p211 = scmp.eq.s32.totalorder %s23, 0
      %p212 = por %p210, %p211
      %s213 = ssub.s32 %s17, %s24
      %p214 = scmp.eq.s32.totalorder %s213, 0
      %s216 = sadd.s32 %s215, 1
      %s217 = scalar_select %p214, %s215, %s216
      %p220 = pneg %p214
      %p221 = scmp.eq.s32.totalorder %s17, 2
      %p222 = por %p220, %p221
      %p223 = scmp.ne.s32.totalorder %s215, %s218
      %p224 = scmp.eq.s32.totalorder %s17, 0
      %p225 = por %p223, %p224
      %p226 = scmp.ne.s32.totalorder %s215, %s218
      %p227 = scmp.eq.s32.totalorder %s22, 2
      %p228 = por %p226, %p227
      %p229 = scmp.ne.s32.totalorder %s218, %s219
      %p230 = scmp.eq.s32.totalorder %s22, 0
      %p231 = por %p229, %p230
      %p232 = scmp.ne.s32.totalorder %s218, %s219
      %p233 = scmp.eq.s32.totalorder %s23, 2
      %p234 = por %p232, %p233
      %p236 = scmp.ne.s32.totalorder %s219, %s235
      %p237 = scmp.eq.s32.totalorder %s23, 0
      %p238 = por %p236, %p237
      %p239 = scmp.le.s32.totalorder 1, %s17
      %p240 = scmp.lt.s32.totalorder %s17, 4
      %p241 = pnand %p239, %p240
      %p242 = pneg %p241
      // Predicated region
      $region9: #{redout_forward.1} parent=5 // pred_check
        _
      $region10: #{redout_forward.1} parent=5 // pred_check_branch
        %244 = sbr.rel (%p241) target = $region12
      $region11: #{redout_forward.1} parent=5 // pred_region
        %s245 = ssub.s32 %s17, 1
        // Predicated region
        $region13: #{redout_forward.1} parent=11 // pred_check
          %p246 = pneg %p90
        $region14: #{redout_forward.1} parent=11 // pred_check_branch
          %248 = sbr.rel (%p246) target = $region16
        $region15: #{redout_forward.1} parent=11 // pred_region
          _
        $region16: #{redout_forward.1} parent=11 // pred_fallthru
          _
        // Predicated region
        $region17: #{redout_forward.1} parent=11 // pred_check
          %p249 = pneg %p111
        $region18: #{redout_forward.1} parent=11 // pred_check_branch
          %251 = sbr.rel (%p249) target = $region20
        $region19: #{redout_forward.1} parent=11 // pred_region
          %s253 = ssub.s32 48, 48
          %254 = vsyncadd [#allocation3], %s253
          %s255 = sshll.u32 [#allocation2], 4
          %s256 = int_to_ptr.vmem [resolvable:$true] %s255
          %261 = dma.hbm_to_vmem [thread:$0]  %s3, 48, %s256, [#allocation3], 16, 16, 1
        $region20: #{redout_forward.1} parent=11 // pred_fallthru
          _
        // Predicated region
        $region21: #{redout_forward.1} parent=11 // pred_check
          %p262 = pneg %p132
        $region22: #{redout_forward.1} parent=11 // pred_check_branch
          %264 = sbr.rel (%p262) target = $region24
        $region23: #{redout_forward.1} parent=11 // pred_region
          _
        $region24: #{redout_forward.1} parent=11 // pred_fallthru
          _
        // Predicated region
        $region25: #{redout_forward.1} parent=11 // pred_check
          %p265 = pneg %p153
        $region26: #{redout_forward.1} parent=11 // pred_check_branch
          %267 = sbr.rel (%p265) target = $region28
        $region27: #{redout_forward.1} parent=11 // pred_region
          %s269 = ssub.s32 48, 48
          %270 = vsyncadd [#allocation5], %s269
          %s271 = sshll.u32 [#allocation4], 4
          %s272 = int_to_ptr.vmem [resolvable:$true] %s271
          %277 = dma.hbm_to_vmem [thread:$0]  %s5, 48, %s272, [#allocation5], 16, 16, 1
        $region28: #{redout_forward.1} parent=11 // pred_fallthru
          _
      $region12: #{redout_forward.1} parent=5 // pred_fallthru
        _
      %p278 = scmp.lt.s32.totalorder %s17, 3
      // Predicated region
      $region29: #{redout_forward.1} parent=5 // pred_check
        %p279 = pneg %p278
      $region30: #{redout_forward.1} parent=5 // pred_check_branch
        %281 = sbr.rel (%p279) target = $region32
      $region31: #{redout_forward.1} parent=5 // pred_region
        // Predicated region
        $region33: #{redout_forward.1} parent=31 // pred_check
          %p282 = pneg %p37
        $region34: #{redout_forward.1} parent=31 // pred_check_branch
          %284 = sbr.rel (%p282) target = $region36
        $region35: #{redout_forward.1} parent=31 // pred_region
          %p285 = scmp.lt.s32.totalorder %s17, 2
          %s286 = scalar_select %p285, %s17, 2
          %s287 = smul.addr %s286, 2
          %s288 = smul.addr %s287, 4
          %s289 = scalar_lea.vmem %s0, %s288
        $region36: #{redout_forward.1} parent=31 // pred_fallthru
          _
        // Predicated region
        $region37: #{redout_forward.1} parent=31 // pred_check
          %p290 = pneg %p63
        $region38: #{redout_forward.1} parent=31 // pred_check_branch
          %292 = sbr.rel (%p290) target = $region40
        $region39: #{redout_forward.1} parent=31 // pred_region
          %p293 = scmp.lt.s32.totalorder %s17, 2
          %s294 = scalar_select %p293, %s17, 2
          %s295 = smul.addr %s294, 2
          %s296 = smul.addr %s295, 4
          %s297 = scalar_lea.vmem %s1, %s296
        $region40: #{redout_forward.1} parent=31 // pred_fallthru
          _
        // Predicated region
        $region41: #{redout_forward.1} parent=31 // pred_check
          %p298 = pneg %p173
        $region42: #{redout_forward.1} parent=31 // pred_check_branch
          %300 = sbr.rel (%p298) target = $region44
        $region43: #{redout_forward.1} parent=31 // pred_region
          %p301 = scmp.lt.s32.totalorder %s17, 2
          %s302 = scalar_select %p301, %s17, 2
          %s303 = smul.addr %s302, 2
          %s304 = smul.addr %s303, 8
          %s305 = scalar_lea.vmem %s6, %s304
        $region44: #{redout_forward.1} parent=31 // pred_fallthru
          _
      $region32: #{redout_forward.1} parent=5 // pred_fallthru
        _
      %p306 = scmp.le.s32.totalorder 1, %s17
      %p307 = scmp.lt.s32.totalorder %s17, 4
      %p308 = pnand %p306, %p307
      %p309 = pneg %p308
      // Predicated region
      $region45: #{redout_forward.1} parent=5 // pred_check
        _
      $region46: #{redout_forward.1} parent=5 // pred_check_branch
        %311 = sbr.rel (%p308) target = $region48
      $region47: #{redout_forward.1} parent=5 // pred_region
        %s312 = ssub.s32 %s17, 1
        // Predicated region
        $region49: #{redout_forward.1} parent=47 // pred_check
          %p313 = pneg %p111
        $region50: #{redout_forward.1} parent=47 // pred_check_branch
          %315 = sbr.rel (%p313) target = $region52
        $region51: #{redout_forward.1} parent=47 // pred_region
          %316 = dma.done [#allocation3], 48
        $region52: #{redout_forward.1} parent=47 // pred_fallthru
          _
        // Predicated region
        $region53: #{redout_forward.1} parent=47 // pred_check
          %p317 = pneg %p153
        $region54: #{redout_forward.1} parent=47 // pred_check_branch
          %319 = sbr.rel (%p317) target = $region56
        $region55: #{redout_forward.1} parent=47 // pred_region
          %320 = dma.done [#allocation5], 48
        $region56: #{redout_forward.1} parent=47 // pred_fallthru
          _
        %p321 = scmp.lt.s32.totalorder %s22, 2
        %s322 = scalar_select %p321, %s22, 2
        %s323 = smul.addr %s322, 2
        %s324 = smul.addr %s323, 4
        %s325 = scalar_lea.vmem %s0, %s324
        %p326 = pneg %p43
        %p327 = pneg %p40
        %p328 = scmp.lt.s32.totalorder %s22, 2
        %s329 = scalar_select %p328, %s22, 2
        %s330 = smul.addr %s329, 2
        %s331 = smul.addr %s330, 4
        %s332 = scalar_lea.vmem %s1, %s331
        %p333 = pneg %p69
        %p334 = pneg %p66
        %p335 = pneg %p90
        %p336 = pneg %p87
        %p337 = pneg %p111
        %p338 = pneg %p108
        %p339 = pneg %p132
        %p340 = pneg %p129
        %p341 = pneg %p153
        %p342 = pneg %p150
        %p343 = scmp.lt.s32.totalorder %s22, 2
        %s344 = scalar_select %p343, %s22, 2
        %s345 = smul.addr %s344, 2
        %s346 = smul.addr %s345, 8
        %s347 = scalar_lea.vmem %s6, %s346
        %p348 = pneg %p179
        %p349 = pneg %p176
        %p350 = pneg %p205
        %p351 = pneg %p202
        %p352 = scmp.lt.s32.totalorder %s22, 2
        %s353 = scalar_select %p352, %s22, 2
        %s354 = smul.addr %s353, 2
        %s355 = smul.addr %s354, 8
        %s356 = scalar_lea.vmem %s7, %s355
        %p357 = pneg %p231
        %p358 = pneg %p228
        %p359 = scmp.lt.s32.totalorder %s22, 2
        %s360 = scalar_select %p359, %s22, 2
        %s361 = scalar_lea.vmem %s8, %s360
        %p362 = scmp.lt.s32.totalorder %s22, 2
        %s363 = scalar_select %p362, %s22, 2
        %s364 = smul.addr %s363, 2
        %s365 = smul.addr %s364, 4
        %s366 = scalar_lea.vmem %s0, %s365
        %p367 = scmp.lt.s32.totalorder %s22, 2
        %s368 = scalar_select %p367, %s22, 2
        %s369 = smul.addr %s368, 2
        %s370 = smul.addr %s369, 4
        %s371 = scalar_lea.vmem %s1, %s370
        %p372 = scmp.lt.s32.totalorder %s22, 2
        %s373 = scalar_select %p372, %s22, 2
        %s374 = smul.addr %s373, 2
        %s375 = smul.addr %s374, 8
        %s376 = scalar_lea.vmem %s6, %s375
        %p377 = scmp.lt.s32.totalorder %s22, 2
        %s378 = scalar_select %p377, %s22, 2
        %s379 = smul.addr %s378, 2
        %s380 = smul.addr %s379, 8
        %s381 = scalar_lea.vmem %s7, %s380
        %p382 = scmp.lt.s32.totalorder %s22, 2
        %s383 = scalar_select %p382, %s22, 2
        %s384 = scalar_lea.vmem %s8, %s383
        %v386 = vld [vmem:[%s366] sm:$0xf]
        %v387 = vld [vmem:[%s366 + $0x4] sm:$0xf]
        %v388 = vld [vmem:[%s371] sm:$0xf]
        %v389 = vld [vmem:[%s371 + $0x4] sm:$0xf]
        %s390 = smul.u32 %s22, 16
        %s391 = smul.addr %s390, 4
        %s392 = scalar_lea.vmem %s2, %s391
        %v393 = vld [vmem:[%s392] sm:$0xf]
        %v394 = vld [vmem:[%s392 + $0x4] sm:$0xf]
        %v395 = vld [vmem:[%s392 + $0x8] sm:$0xf]
        %v396 = vld [vmem:[%s392 + $0xc] sm:$0xf]
        %v397 = vld [vmem:[%s392 + $0x10] sm:$0xf]
        %v398 = vld [vmem:[%s392 + $0x14] sm:$0xf]
        %v399 = vld [vmem:[%s392 + $0x18] sm:$0xf]
        %v400 = vld [vmem:[%s392 + $0x1c] sm:$0xf]
        %v401 = vld [vmem:[%s392 + $0x20] sm:$0xf]
        %v402 = vld [vmem:[%s392 + $0x24] sm:$0xf]
        %v403 = vld [vmem:[%s392 + $0x28] sm:$0xf]
        %v404 = vld [vmem:[%s392 + $0x2c] sm:$0xf]
        %v405 = vld [vmem:[%s392 + $0x30] sm:$0xf]
        %v406 = vld [vmem:[%s392 + $0x34] sm:$0xf]
        %v407 = vld [vmem:[%s392 + $0x38] sm:$0xf]
        %v408 = vld [vmem:[%s392 + $0x3c] sm:$0xf]
        %s409 = smul.addr %s390, 4
        %s410 = scalar_lea.vmem %s4, %s409
        %v411 = vld [vmem:[%s410] sm:$0xf]
        %v412 = vld [vmem:[%s410 + $0x4] sm:$0xf]
        %v413 = vld [vmem:[%s410 + $0x8] sm:$0xf]
        %v414 = vld [vmem:[%s410 + $0xc] sm:$0xf]
        %v415 = vld [vmem:[%s410 + $0x10] sm:$0xf]
        %v416 = vld [vmem:[%s410 + $0x14] sm:$0xf]
        %v417 = vld [vmem:[%s410 + $0x18] sm:$0xf]
        %v418 = vld [vmem:[%s410 + $0x1c] sm:$0xf]
        %v419 = vld [vmem:[%s410 + $0x20] sm:$0xf]
        %v420 = vld [vmem:[%s410 + $0x24] sm:$0xf]
        %v421 = vld [vmem:[%s410 + $0x28] sm:$0xf]
        %v422 = vld [vmem:[%s410 + $0x2c] sm:$0xf]
        %v423 = vld [vmem:[%s410 + $0x30] sm:$0xf]
        %v424 = vld [vmem:[%s410 + $0x34] sm:$0xf]
        %v425 = vld [vmem:[%s410 + $0x38] sm:$0xf]
        %v426 = vld [vmem:[%s410 + $0x3c] sm:$0xf]
        %s427 = scalar_lea.vmem [#allocation2], %s22
        %v428 = vld [vmem:[%s427] sm:$0x1]
        %s429 = scalar_lea.vmem [#allocation4], %s22
        %v430 = vld [vmem:[%s429] sm:$0x1]
        %v432 = vlaneseq
        %v433 = vshrl.u32 %v432, 7
        %v434 = vsub.s32 0, %v433
        %v435 = vrot.slane %v428, %v434
        %v439 = vunpack.c.l.b16 %v386
        %v440 = vunpack.c.l.b16 %v387
        %v441 = vpack.c.b16 %v440, %v439
        %v459 = vunpack.c.l.b16 %v393
        %v460 = vunpack.c.l.b16 %v394
        %v461 = vunpack.c.l.b16 %v395
        %v462 = vunpack.c.l.b16 %v396
        %v463 = vunpack.c.l.b16 %v397
        %v464 = vunpack.c.l.b16 %v398
        %v465 = vunpack.c.l.b16 %v399
        %v466 = vunpack.c.l.b16 %v400
        %v467 = vunpack.c.l.b16 %v401
        %v468 = vunpack.c.l.b16 %v402
        %v469 = vunpack.c.l.b16 %v403
        %v470 = vunpack.c.l.b16 %v404
        %v471 = vunpack.c.l.b16 %v405
        %v472 = vunpack.c.l.b16 %v406
        %v473 = vunpack.c.l.b16 %v407
        %v474 = vunpack.c.l.b16 %v408
        %v475 = vpack.c.b16 %v460, %v459
        %v476 = vpack.c.b16 %v462, %v461
        %v477 = vpack.c.b16 %v464, %v463
        %v478 = vpack.c.b16 %v466, %v465
        %v479 = vpack.c.b16 %v468, %v467
        %v480 = vpack.c.b16 %v470, %v469
        %v481 = vpack.c.b16 %v472, %v471
        %v482 = vpack.c.b16 %v474, %v473
        %491 = vmatprep.subr.bf16.mxu0 0
        %492 = vmatpush1.bf16.msra.mxu0 %v475
        %493 = vmatprep.subr.bf16.mxu0 0
        %494 = vmatpush1.bf16.msra.mxu0 %v476
        %495 = vmatprep.subr.bf16.mxu0 0
        %496 = vmatpush1.bf16.msra.mxu0 %v477
        %497 = vmatprep.subr.bf16.mxu0 0
        %498 = vmatpush1.bf16.msra.mxu0 %v478
        %499 = vmatprep.subr.bf16.mxu0 0
        %500 = vmatpush1.bf16.msra.mxu0 %v479
        %501 = vmatprep.subr.bf16.mxu0 0
        %502 = vmatpush1.bf16.msra.mxu0 %v480
        %503 = vmatprep.subr.bf16.mxu0 0
        %504 = vmatpush1.bf16.msra.mxu0 %v481
        %505 = vmatprep.subr.bf16.mxu0 0
        %506 = vmatpush1.bf16.msra.mxu0 %v482
        %507 = vmatprep.subr.bf16.mxu0 0
        %508 = vmatpush1.bf16.msra.mxu0 0
        %509 = vmatprep.subr.bf16.mxu0 0
        %510 = vmatpush1.bf16.msra.mxu0 0
        %511 = vmatprep.subr.bf16.mxu0 0
        %512 = vmatpush1.bf16.msra.mxu0 0
        %513 = vmatprep.subr.bf16.mxu0 0
        %514 = vmatpush1.bf16.msra.mxu0 0
        %515 = vmatprep.subr.bf16.mxu0 0
        %516 = vmatpush1.bf16.msra.mxu0 0
        %517 = vmatprep.subr.bf16.mxu0 0
        %518 = vmatpush1.bf16.msra.mxu0 0
        %519 = vmatprep.subr.bf16.mxu0 0
        %520 = vmatpush1.bf16.msra.mxu0 0
        %521 = vmatprep.subr.bf16.mxu0 0
        %522 = vmatpush1.bf16.msra.mxu0 0
        %523 = vmatprep.mubr.bf16.mxu0 0
        %524 = vmatmul.mubr.bf16.gmra.mrb[0].mxu0 %v441
        %v525 = vpop.f32.mrb[0].mxu0
        %v526 = vadd.f32 %v435, %v525
        %v527 = vpop.f32.mrb[0].mxu0
        %v528 = vpop.f32.mrb[0].mxu0
        %v529 = vadd.f32 %v435, %v528
        %v530 = vpop.f32.mrb[0].mxu0
        %531 = vdwg.mxu0
        %v532 = vpack.c.bf16 %v529, %v526
        %v535 = vunpack.c.l.b16 %v388
        %v536 = vunpack.c.l.b16 %v389
        %v537 = vpack.c.b16 %v536, %v535
        %vm538 = vcmask 130048
        %v540 = vsel %vm538, %v537, 0
        %542 = vmatprep.subr.bf16.mxu0 0
        %543 = vmatpush1.bf16.msra.mxu0 %v532
        %544 = vmatprep.subr.bf16.mxu0 0
        %545 = vmatpush1.bf16.msra.mxu0 0
        %546 = vmatprep.subr.bf16.mxu0 0
        %547 = vmatpush1.bf16.msra.mxu0 0
        %548 = vmatprep.subr.bf16.mxu0 0
        %549 = vmatpush1.bf16.msra.mxu0 0
        %550 = vmatprep.subr.bf16.mxu0 0
        %551 = vmatpush1.bf16.msra.mxu0 0
        %552 = vmatprep.subr.bf16.mxu0 0
        %553 = vmatpush1.bf16.msra.mxu0 0
        %554 = vmatprep.subr.bf16.mxu0 0
        %555 = vmatpush1.bf16.msra.mxu0 0
        %556 = vmatprep.subr.bf16.mxu0 0
        %557 = vmatpush1.bf16.msra.mxu0 0
        %558 = vmatprep.subr.bf16.mxu0 0
        %559 = vmatpush1.bf16.msra.mxu0 0
        %560 = vmatprep.subr.bf16.mxu0 0
        %561 = vmatpush1.bf16.msra.mxu0 0
        %562 = vmatprep.subr.bf16.mxu0 0
        %563 = vmatpush1.bf16.msra.mxu0 0
        %564 = vmatprep.subr.bf16.mxu0 0
        %565 = vmatpush1.bf16.msra.mxu0 0
        %566 = vmatprep.subr.bf16.mxu0 0
        %567 = vmatpush1.bf16.msra.mxu0 0
        %568 = vmatprep.subr.bf16.mxu0 0
        %569 = vmatpush1.bf16.msra.mxu0 0
        %570 = vmatprep.subr.bf16.mxu0 0
        %571 = vmatpush1.bf16.msra.mxu0 0
        %572 = vmatprep.subr.bf16.mxu0 0
        %573 = vmatpush1.bf16.msra.mxu0 0
        %574 = vmatprep.mubr.bf16.mxu0 0
        %575 = vmatmul.mubr.bf16.gmra.mrb[0].mxu0 %v540
        %v576 = vpop.f32.mrb[0].mxu0
        %v577 = vadd.f32 0.0, %v576
        %v578 = vpop.f32.mrb[0].mxu0
        %v579 = vpop.f32.mrb[0].mxu0
        %v580 = vadd.f32 0.0, %v579
        %v581 = vpop.f32.mrb[0].mxu0
        %582 = vdwg.mxu0
        %v583 = vtanh.pop %v577
        %v584 = vtanh.pop %v580
        %v585 = vmax.f32 %v583, 0.0
        %v586 = vmax.f32 %v584, 0.0
        %v587 = vpack.c.bf16 %v586, %v585
        %v589 = vlaneseq
        %v590 = vshrl.u32 %v589, 7
        %v591 = vsub.s32 0, %v590
        %v592 = vrot.slane %v430, %v591
        %v610 = vunpack.c.l.b16 %v411
        %v611 = vunpack.c.l.b16 %v412
        %v612 = vunpack.c.l.b16 %v413
        %v613 = vunpack.c.l.b16 %v414
        %v614 = vunpack.c.l.b16 %v415
        %v615 = vunpack.c.l.b16 %v416
        %v616 = vunpack.c.l.b16 %v417
        %v617 = vunpack.c.l.b16 %v418
        %v618 = vunpack.c.l.b16 %v419
        %v619 = vunpack.c.l.b16 %v420
        %v620 = vunpack.c.l.b16 %v421
        %v621 = vunpack.c.l.b16 %v422
        %v622 = vunpack.c.l.b16 %v423
        %v623 = vunpack.c.l.b16 %v424
        %v624 = vunpack.c.l.b16 %v425
        %v625 = vunpack.c.l.b16 %v426
        %v626 = vpack.c.b16 %v611, %v610
        %v627 = vpack.c.b16 %v613, %v612
        %v628 = vpack.c.b16 %v615, %v614
        %v629 = vpack.c.b16 %v617, %v616
        %v630 = vpack.c.b16 %v619, %v618
        %v631 = vpack.c.b16 %v621, %v620
        %v632 = vpack.c.b16 %v623, %v622
        %v633 = vpack.c.b16 %v625, %v624
        %642 = vmatprep.subr.bf16.mxu0 0
        %643 = vmatpush1.bf16.msra.mxu0 %v626
        %644 = vmatprep.subr.bf16.mxu0 0
        %645 = vmatpush1.bf16.msra.mxu0 %v627
        %646 = vmatprep.subr.bf16.mxu0 0
        %647 = vmatpush1.bf16.msra.mxu0 %v628
        %648 = vmatprep.subr.bf16.mxu0 0
        %649 = vmatpush1.bf16.msra.mxu0 %v629
        %650 = vmatprep.subr.bf16.mxu0 0
        %651 = vmatpush1.bf16.msra.mxu0 %v630
        %652 = vmatprep.subr.bf16.mxu0 0
        %653 = vmatpush1.bf16.msra.mxu0 %v631
        %654 = vmatprep.subr.bf16.mxu0 0
        %655 = vmatpush1.bf16.msra.mxu0 %v632
        %656 = vmatprep.subr.bf16.mxu0 0
        %657 = vmatpush1.bf16.msra.mxu0 %v633
        %658 = vmatprep.subr.bf16.mxu0 0
        %659 = vmatpush1.bf16.msra.mxu0 0
        %660 = vmatprep.subr.bf16.mxu0 0
        %661 = vmatpush1.bf16.msra.mxu0 0
        %662 = vmatprep.subr.bf16.mxu0 0
        %663 = vmatpush1.bf16.msra.mxu0 0
        %664 = vmatprep.subr.bf16.mxu0 0
        %665 = vmatpush1.bf16.msra.mxu0 0
        %666 = vmatprep.subr.bf16.mxu0 0
        %667 = vmatpush1.bf16.msra.mxu0 0
        %668 = vmatprep.subr.bf16.mxu0 0
        %669 = vmatpush1.bf16.msra.mxu0 0
        %670 = vmatprep.subr.bf16.mxu0 0
        %671 = vmatpush1.bf16.msra.mxu0 0
        %672 = vmatprep.subr.bf16.mxu0 0
        %673 = vmatpush1.bf16.msra.mxu0 0
        %674 = vmatprep.mubr.bf16.mxu0 0
        %675 = vmatmul.mubr.bf16.gmra.mrb[0].mxu0 %v587
        %v676 = vpop.f32.mrb[0].mxu0
        %v677 = vadd.f32 %v592, %v676
        %v678 = vpop.f32.mrb[0].mxu0
        %v679 = vpop.f32.mrb[0].mxu0
        %v680 = vadd.f32 %v592, %v679
        %v681 = vpop.f32.mrb[0].mxu0
        %682 = vdwg.mxu0
        %v683 = vpack.c.bf16 %v680, %v677
        %684 = vmatprep.subr.bf16.mxu0 0
        %685 = vmatpush1.bf16.msra.mxu0 %v683
        %686 = vmatprep.subr.bf16.mxu0 0
        %687 = vmatpush1.bf16.msra.mxu0 0
        %688 = vmatprep.subr.bf16.mxu0 0
        %689 = vmatpush1.bf16.msra.mxu0 0
        %690 = vmatprep.subr.bf16.mxu0 0
        %691 = vmatpush1.bf16.msra.mxu0 0
        %692 = vmatprep.subr.bf16.mxu0 0
        %693 = vmatpush1.bf16.msra.mxu0 0
        %694 = vmatprep.subr.bf16.mxu0 0
        %695 = vmatpush1.bf16.msra.mxu0 0
        %696 = vmatprep.subr.bf16.mxu0 0
        %697 = vmatpush1.bf16.msra.mxu0 0
        %698 = vmatprep.subr.bf16.mxu0 0
        %699 = vmatpush1.bf16.msra.mxu0 0
        %700 = vmatprep.subr.bf16.mxu0 0
        %701 = vmatpush1.bf16.msra.mxu0 0
        %702 = vmatprep.subr.bf16.mxu0 0
        %703 = vmatpush1.bf16.msra.mxu0 0
        %704 = vmatprep.subr.bf16.mxu0 0
        %705 = vmatpush1.bf16.msra.mxu0 0
        %706 = vmatprep.subr.bf16.mxu0 0
        %707 = vmatpush1.bf16.msra.mxu0 0
        %708 = vmatprep.subr.bf16.mxu0 0
        %709 = vmatpush1.bf16.msra.mxu0 0
        %710 = vmatprep.subr.bf16.mxu0 0
        %711 = vmatpush1.bf16.msra.mxu0 0
        %712 = vmatprep.subr.bf16.mxu0 0
        %713 = vmatpush1.bf16.msra.mxu0 0
        %714 = vmatprep.subr.bf16.mxu0 0
        %715 = vmatpush1.bf16.msra.mxu0 0
        %716 = vmatprep.mubr.bf16.mxu0 0
        %717 = vmatmul.mubr.bf16.gmra.mrb[0].mxu0 %v540
        %v718 = vpop.f32.mrb[0].mxu0
        %v719 = vadd.f32 0.0, %v718
        %v720 = vpop.f32.mrb[0].mxu0
        %v721 = vpop.f32.mrb[0].mxu0
        %v722 = vadd.f32 0.0, %v721
        %v723 = vpop.f32.mrb[0].mxu0
        %724 = vdwg.mxu0
        %v725 = vtanh.pop %v719
        %v726 = vtanh.pop %v722
        %727 = vst [vmem:[%s381] sm:$0xff] %v725
        %728 = vst [vmem:[%s381 + $0x8] sm:$0xff] %v726
        %v729 = vld [vmem:[%s376] sm:$0xff]
        %v730 = vld [vmem:[%s376 + $0x8] sm:$0xff]
        %732 = vset.pattern.permute.xlu0 0
        %733 = vperm.xlu0 %732, %v729
        %v734 = vpop.permute.xlu0 %733
        %737 = vset.pattern.permute.xlu0 0
        %738 = vperm.xlu0 %737, %v730
        %v739 = vpop.permute.xlu0 %738
        %v741 = vmul.f32 %v725, %v734
        %v742 = vmul.f32 %v726, %v739
        %v743 = vadd.f32 %v741, %v742
        %v744 = vrot.slane %v743, 4
        %v745 = vadd.f32 %v743, %v744
        %v746 = vrot.slane %v745, 2
        %v747 = vadd.f32 %v745, %v746
        %v748 = vrot.slane %v747, 1
        %v749 = vadd.f32 %v747, %v748
        %750 = vst [vmem:[%s384] sm:$0x1] %v749
        %p751 = scmp.lt.s32.totalorder %s22, 2
        %s752 = scalar_select %p751, %s22, 2
        %s753 = smul.addr %s752, 2
        %s754 = smul.addr %s753, 8
        %s755 = scalar_lea.vmem %s7, %s754
        %p756 = scmp.lt.s32.totalorder %s22, 2
        %s757 = scalar_select %p756, %s22, 2
        %s758 = scalar_lea.vmem %s8, %s757
        // Predicated region
        $region57: #{redout_forward.1} parent=47 // pred_check
          %p759 = pneg %p202
        $region58: #{redout_forward.1} parent=47 // pred_check_branch
          %761 = sbr.rel (%p759) target = $region60
        $region59: #{redout_forward.1} parent=47 // pred_region
          _
        $region60: #{redout_forward.1} parent=47 // pred_fallthru
          _
        // Predicated region
        $region61: #{redout_forward.1} parent=47 // pred_check
          %p762 = pneg %p228
        $region62: #{redout_forward.1} parent=47 // pred_check_branch
          %764 = sbr.rel (%p762) target = $region64
        $region63: #{redout_forward.1} parent=47 // pred_region
          _
        $region64: #{redout_forward.1} parent=47 // pred_fallthru
          _
      $region48: #{redout_forward.1} parent=5 // pred_fallthru
        _
      %p765 = scmp.le.s32.totalorder 2, %s17
      // Predicated region
      $region65: #{redout_forward.1} parent=5 // pred_check
        %p766 = pneg %p765
      $region66: #{redout_forward.1} parent=5 // pred_check_branch
        %768 = sbr.rel (%p766) target = $region68
      $region67: #{redout_forward.1} parent=5 // pred_region
        %s769 = ssub.s32 %s17, 2
        // Predicated region
        $region69: #{redout_forward.1} parent=67 // pred_check
          %p770 = pneg %p208
        $region70: #{redout_forward.1} parent=67 // pred_check_branch
          %772 = sbr.rel (%p770) target = $region72
        $region71: #{redout_forward.1} parent=67 // pred_region
          %p773 = scmp.lt.s32.totalorder %s23, 2
          %s774 = scalar_select %p773, %s23, 2
          %s775 = smul.addr %s774, 2
          %s776 = smul.addr %s775, 8
          %s777 = scalar_lea.vmem %s7, %s776
        $region72: #{redout_forward.1} parent=67 // pred_fallthru
          _
        // Predicated region
        $region73: #{redout_forward.1} parent=67 // pred_check
          %p778 = pneg %p234
        $region74: #{redout_forward.1} parent=67 // pred_check_branch
          %780 = sbr.rel (%p778) target = $region76
        $region75: #{redout_forward.1} parent=67 // pred_region
          %p781 = scmp.lt.s32.totalorder %s23, 2
          %s782 = scalar_select %p781, %s23, 2
          %s783 = scalar_lea.vmem %s8, %s782
        $region76: #{redout_forward.1} parent=67 // pred_fallthru
          _
      $region68: #{redout_forward.1} parent=5 // pred_fallthru
        _
    $region6: #{redout_forward.1} parent=1 // loop_footer
      %s21 = sadd.s32 1, %s17
    $region7: #{redout_forward.1} parent=1 // loop_footer_branch
      %16 = sbr.rel target = $region3
    $region8: #{redout_forward.1} parent=1 // loop_exit
      _
    %784 = vsyncpa [#allocation3], 1
    %s785 = scalar_lea.sflag [#allocation3], 1
    %786 = vsyncpa %s785, 1
    %787 = vsyncpa [#allocation5], 1

</llo_original>
